<compile_context>
chip_gen: v6e
topology: v6e:2x2x1
jax: 0.10.0
libtpu: 0.0.40
codegen_flags: <defaults>
</compile_context>

<pallas_src>
import math

import jax
import jax.numpy as jnp
from jax.experimental import pallas as pl
from jax.experimental.pallas import tpu as pltpu

BN_EPS = 1e-5
BN_SCALE = 1.0 / math.sqrt(1.0 + BN_EPS)   # eval-mode BN with fresh running stats


# ------------------------------ fused Pallas kernel ---------------------------
def _gated_kernel(x_ref, y_ref, wblk_ref, bblk_ref, o_ref):
    # x_ref / y_ref / o_ref : [B, C, HW] f32  (whole batch resident in VMEM;
    #                         channels on sublanes, pixels on lanes).
    # wblk_ref              : [2C, 2C] f32 block_diag(w1, w2) with BN scale folded in.
    # bblk_ref              : [2C, 1]  f32 stacked (scaled) conv biases.
    w_blk = wblk_ref[...]
    b_blk = bblk_ref[...]
    B = x_ref.shape[0]
    C = x_ref.shape[1]

    for b in range(B):                        # B is static -> fully unrolled
        x = x_ref[b]                          # [C, HW]
        y = y_ref[b]                          # [C, HW]
        # Stack along sublanes (C=16 is 8-aligned -> free), one fused MXU pass.
        s = jnp.concatenate([x, y], axis=0)   # [2C, HW]
        c = jnp.dot(w_blk, s, preferred_element_type=jnp.float32) + b_blk
        z1 = jnp.maximum(c[:C], 0.0)          # ReLU(BN(conv1x1(x)))
        z2 = jnp.maximum(c[C:], 0.0)          # ReLU(BN(conv1x1(y)))
        z = jax.nn.sigmoid(z1 + z2)           # EUP
        # gated blend + final BatchNorm (scale folded into one multiply)
        o_ref[b] = (y + z * (x - y)) * BN_SCALE


def gated_pallas(x, y, w_blk, b_blk):
    """Fused Gated forward.  x, y: [B, C, H, W] f32 (NCHW).  Returns [B, C, H, W] f32."""
    Bc, C, H, W = x.shape
    HW = H * W
    x3 = x.reshape(Bc, C, HW)
    y3 = y.reshape(Bc, C, HW)

    out = pl.pallas_call(
        _gated_kernel,
        out_shape=jax.ShapeDtypeStruct((Bc, C, HW), jnp.float32),
        # No grid: one step covers the whole batch; every operand is mapped
        # whole-array into VMEM (footprint ~240 KiB << any VMEM limit).
        in_specs=[
            pl.BlockSpec(memory_space=pltpu.MemorySpace.VMEM),   # x
            pl.BlockSpec(memory_space=pltpu.MemorySpace.VMEM),   # y
            pl.BlockSpec(memory_space=pltpu.MemorySpace.VMEM),   # W_blk
            pl.BlockSpec(memory_space=pltpu.MemorySpace.VMEM),   # b_blk
        ],
        out_specs=pl.BlockSpec(memory_space=pltpu.MemorySpace.VMEM),
    )(x3, y3, w_blk, b_blk)

    return out.reshape(Bc, C, H, W)


@jax.jit
def gated_forward(params, x, y):
    return gated_pallas(x, y, params['w_blk'], params['b_blk'])


# --------------------------- deterministic parameter init ---------------------
def init_raw_params(dims, key):
    # PyTorch Conv2d default init: kaiming_uniform(a=sqrt(5)) -> bound = 1/sqrt(fan_in),
    # bias ~ U(-1/sqrt(fan_in), 1/sqrt(fan_in)).  fan_in = dims (1x1 kernel).
    k1, k2, k3, k4 = jax.random.split(key, 4)
    bound = 1.0 / math.sqrt(dims)
    return {
        'w1': jax.random.uniform(k1, (dims, dims), jnp.float32, -bound, bound),
        'w2': jax.random.uniform(k2, (dims, dims), jnp.float32, -bound, bound),
        'b1': jax.random.uniform(k3, (dims, 1), jnp.float32, -bound, bound),
        'b2': jax.random.uniform(k4, (dims, 1), jnp.float32, -bound, bound),
    }


def fuse_params(raw):
    # Fold eval-mode BN scale into the conv weights/biases (in f32) and fuse the
    # two 1x1 convs into one block-diagonal matrix -> single MXU pass per image.
    dims = raw['w1'].shape[0]
    zeros = jnp.zeros((dims, dims), jnp.float32)
    w_blk = jnp.block([[raw['w1'] * BN_SCALE, zeros],
                       [zeros, raw['w2'] * BN_SCALE]])                 # [2C, 2C]
    b_blk = jnp.concatenate([raw['b1'], raw['b2']], axis=0) * BN_SCALE  # [2C, 1]
    return {'w_blk': w_blk, 'b_blk': b_blk}


# ----------------------------- pure-JAX reference ------------------------------
def gated_reference(x, y, w1, b1, w2, b2):
    B, C, H, W = x.shape
    x2 = x.reshape(B, C, H * W)
    y2 = y.reshape(B, C, H * W)
    c1 = jnp.einsum('oc,bcp->bop', w1, x2) + b1[None]
    c2 = jnp.einsum('oc,bcp->bop', w2, y2) + b2[None]
    z1 = jnp.maximum(c1 * BN_SCALE, 0.0)
    z2 = jnp.maximum(c2 * BN_SCALE, 0.0)
    z = jax.nn.sigmoid(z1 + z2)
    res = x2 * z + y2 * (1.0 - z)
    return (res * BN_SCALE).reshape(B, C, H, W)


# ------------------------------------- main ------------------------------------
if __name__ == "__main__":
    DIMS = 16      # channel count (matches Gated(dims=CH2) usage in the model)
    B, T, V = 2, 8, 19

    key = jax.random.PRNGKey(0)
    kp, kx, ky = jax.random.split(key, 3)
    raw = init_raw_params(DIMS, kp)
    params = fuse_params(raw)
    x = jax.random.normal(kx, (B, DIMS, T, V), jnp.float32)
    y = jax.random.normal(ky, (B, DIMS, T, V), jnp.float32)

    out = gated_forward(params, x, y)
    out = jax.block_until_ready(out)

    assert out.shape == (B, DIMS, T, V), out.shape
    assert bool(jnp.all(jnp.isfinite(out)))

    ref = gated_reference(x, y, raw['w1'], raw['b1'], raw['w2'], raw['b2'])
    max_err = float(jnp.max(jnp.abs(out - ref)))
    assert max_err < 5e-2, f"max abs error vs reference: {max_err}"

    print("KERNEL_OK")
</pallas_src>

<mosaic_0001>
module attributes {stable_mosaic.version = 11 : i64} {
  func.func @_gated_kernel(%arg0: memref<2x16x152xf32, #tpu.memory_space<vmem>>, %arg1: memref<2x16x152xf32, #tpu.memory_space<vmem>>, %arg2: memref<32x32xf32, #tpu.memory_space<vmem>>, %arg3: memref<32x1xf32, #tpu.memory_space<vmem>>, %arg4: memref<2x16x152xf32, #tpu.memory_space<vmem>>) attributes {dimension_semantics = [], scalar_prefetch = 0 : i64, scratch_operands = 0 : i64, tpu.core_type = #tpu.core_type<tc>} {
    %c0 = arith.constant 0 : index
    %c0_0 = arith.constant 0 : index
    %0 = vector.load %arg2[%c0, %c0_0] : memref<32x32xf32, #tpu.memory_space<vmem>>, vector<32x32xf32>
    %c0_1 = arith.constant 0 : index
    %c0_2 = arith.constant 0 : index
    %1 = vector.load %arg3[%c0_1, %c0_2] : memref<32x1xf32, #tpu.memory_space<vmem>>, vector<32x1xf32>
    %c0_3 = arith.constant 0 : index
    %c0_4 = arith.constant 0 : index
    %c0_5 = arith.constant 0 : index
    %2 = vector.load %arg0[%c0_3, %c0_4, %c0_5] : memref<2x16x152xf32, #tpu.memory_space<vmem>>, vector<1x16x152xf32>
    %3 = vector.shape_cast %2 : vector<1x16x152xf32> to vector<16x152xf32>
    %c0_6 = arith.constant 0 : index
    %c0_7 = arith.constant 0 : index
    %c0_8 = arith.constant 0 : index
    %4 = vector.load %arg1[%c0_6, %c0_7, %c0_8] : memref<2x16x152xf32, #tpu.memory_space<vmem>>, vector<1x16x152xf32>
    %5 = vector.shape_cast %4 : vector<1x16x152xf32> to vector<16x152xf32>
    %6 = tpu.concatenate %3, %5 in 0 : vector<16x152xf32>, vector<16x152xf32> -> vector<32x152xf32>
    %cst = arith.constant dense<0.000000e+00> : vector<32x152xf32>
    %7 = tpu.matmul %0, %6, %cst {dimension_numbers = #tpu.dot_dimension_numbers<[1], [0], [0], [1], [0, 0, 1, 1], [], []>} : vector<32x32xf32>, vector<32x152xf32>, vector<32x152xf32> -> vector<32x152xf32>
    %8 = vector.broadcast %1 : vector<32x1xf32> to vector<32x152xf32>
    %9 = arith.addf %7, %8 : vector<32x152xf32>
    %10 = vector.extract_strided_slice %9 {offsets = [0, 0], sizes = [16, 152], strides = [1, 1]} : vector<32x152xf32> to vector<16x152xf32>
    %cst_9 = arith.constant 0.000000e+00 : f32
    %11 = vector.broadcast %cst_9 : f32 to vector<16x152xf32>
    %12 = arith.maximumf %10, %11 : vector<16x152xf32>
    %13 = vector.extract_strided_slice %9 {offsets = [16, 0], sizes = [16, 152], strides = [1, 1]} : vector<32x152xf32> to vector<16x152xf32>
    %cst_10 = arith.constant 0.000000e+00 : f32
    %14 = vector.broadcast %cst_10 : f32 to vector<16x152xf32>
    %15 = arith.maximumf %13, %14 : vector<16x152xf32>
    %16 = arith.addf %12, %15 : vector<16x152xf32>
    %17 = arith.negf %16 : vector<16x152xf32>
    %18 = math.exp %17 : vector<16x152xf32>
    %cst_11 = arith.constant 1.000000e+00 : f32
    %19 = vector.broadcast %cst_11 : f32 to vector<16x152xf32>
    %20 = arith.addf %19, %18 : vector<16x152xf32>
    %21 = arith.divf %19, %20 : vector<16x152xf32>
    %22 = arith.subf %3, %5 : vector<16x152xf32>
    %23 = arith.mulf %21, %22 : vector<16x152xf32>
    %24 = arith.addf %5, %23 : vector<16x152xf32>
    %cst_12 = arith.constant 0.999994993 : f32
    %25 = vector.broadcast %cst_12 : f32 to vector<16x152xf32>
    %26 = arith.mulf %24, %25 : vector<16x152xf32>
    %c0_13 = arith.constant 0 : index
    %c0_14 = arith.constant 0 : index
    %c0_15 = arith.constant 0 : index
    %27 = vector.load %arg4[%c0_13, %c0_14, %c0_15] : memref<2x16x152xf32, #tpu.memory_space<vmem>>, vector<1x16x152xf32>
    %28 = vector.shape_cast %27 : vector<1x16x152xf32> to vector<16x152xf32>
    %29 = vector.shape_cast %26 : vector<16x152xf32> to vector<1x16x152xf32>
    tpu.vector_store %arg4[%c0_13, %c0_14, %c0_15], %29 {strides = array<i32>} : memref<2x16x152xf32, #tpu.memory_space<vmem>>, vector<1x16x152xf32>,
    %c1 = arith.constant 1 : index
    %c0_16 = arith.constant 0 : index
    %c0_17 = arith.constant 0 : index
    %30 = vector.load %arg0[%c1, %c0_16, %c0_17] : memref<2x16x152xf32, #tpu.memory_space<vmem>>, vector<1x16x152xf32>
    %31 = vector.shape_cast %30 : vector<1x16x152xf32> to vector<16x152xf32>
    %c1_18 = arith.constant 1 : index
    %c0_19 = arith.constant 0 : index
    %c0_20 = arith.constant 0 : index
    %32 = vector.load %arg1[%c1_18, %c0_19, %c0_20] : memref<2x16x152xf32, #tpu.memory_space<vmem>>, vector<1x16x152xf32>
    %33 = vector.shape_cast %32 : vector<1x16x152xf32> to vector<16x152xf32>
    %34 = tpu.concatenate %31, %33 in 0 : vector<16x152xf32>, vector<16x152xf32> -> vector<32x152xf32>
    %cst_21 = arith.constant dense<0.000000e+00> : vector<32x152xf32>
    %35 = tpu.matmul %0, %34, %cst_21 {dimension_numbers = #tpu.dot_dimension_numbers<[1], [0], [0], [1], [0, 0, 1, 1], [], []>} : vector<32x32xf32>, vector<32x152xf32>, vector<32x152xf32> -> vector<32x152xf32>
    %36 = vector.broadcast %1 : vector<32x1xf32> to vector<32x152xf32>
    %37 = arith.addf %35, %36 : vector<32x152xf32>
    %38 = vector.extract_strided_slice %37 {offsets = [0, 0], sizes = [16, 152], strides = [1, 1]} : vector<32x152xf32> to vector<16x152xf32>
    %cst_22 = arith.constant 0.000000e+00 : f32
    %39 = vector.broadcast %cst_22 : f32 to vector<16x152xf32>
    %40 = arith.maximumf %38, %39 : vector<16x152xf32>
    %41 = vector.extract_strided_slice %37 {offsets = [16, 0], sizes = [16, 152], strides = [1, 1]} : vector<32x152xf32> to vector<16x152xf32>
    %cst_23 = arith.constant 0.000000e+00 : f32
    %42 = vector.broadcast %cst_23 : f32 to vector<16x152xf32>
    %43 = arith.maximumf %41, %42 : vector<16x152xf32>
    %44 = arith.addf %40, %43 : vector<16x152xf32>
    %45 = arith.negf %44 : vector<16x152xf32>
    %46 = math.exp %45 : vector<16x152xf32>
    %cst_24 = arith.constant 1.000000e+00 : f32
    %47 = vector.broadcast %cst_24 : f32 to vector<16x152xf32>
    %48 = arith.addf %47, %46 : vector<16x152xf32>
    %49 = arith.divf %47, %48 : vector<16x152xf32>
    %50 = arith.subf %31, %33 : vector<16x152xf32>
    %51 = arith.mulf %49, %50 : vector<16x152xf32>
    %52 = arith.addf %33, %51 : vector<16x152xf32>
    %cst_25 = arith.constant 0.999994993 : f32
    %53 = vector.broadcast %cst_25 : f32 to vector<16x152xf32>
    %54 = arith.mulf %52, %53 : vector<16x152xf32>
    %c1_26 = arith.constant 1 : index
    %c0_27 = arith.constant 0 : index
    %c0_28 = arith.constant 0 : index
    %55 = vector.load %arg4[%c1_26, %c0_27, %c0_28] : memref<2x16x152xf32, #tpu.memory_space<vmem>>, vector<1x16x152xf32>
    %56 = vector.shape_cast %55 : vector<1x16x152xf32> to vector<16x152xf32>
    %57 = vector.shape_cast %54 : vector<16x152xf32> to vector<1x16x152xf32>
    tpu.vector_store %arg4[%c1_26, %c0_27, %c0_28], %57 {strides = array<i32>} : memref<2x16x152xf32, #tpu.memory_space<vmem>>, vector<1x16x152xf32>,
    return
  }
}

</mosaic_0001>

<llo_original>
// kernel: gated_forward.1
$region0: #{gated_forward.1}
  #allocation0 [shape = 'u32[]', space=smem, size = 0x4, offset = 0x4, fixed_abs, tag = 'smem constant byte address 0x4 - core index']
  #allocation1 [shape = 'u32[144,128]{1,0:T(1,128)}', space=vmem, size = 0x12000, scoped, tag = 'internal scratch']
  %s0 = inlined_call_operand.vmem [shape: f32[2,16,152], index: 0, kind: input, shape index: {}]
  %s1 = inlined_call_operand.vmem [shape: f32[2,16,152], index: 1, kind: input, shape index: {}]
  %s2 = inlined_call_operand.vmem [shape: f32[32,32], index: 2, kind: input, shape index: {}]
  %s3 = inlined_call_operand.vmem [shape: f32[32,1], index: 3, kind: input, shape index: {}]
  %s4 = inlined_call_operand.vmem [shape: f32[2,16,152], index: 4, kind: output, shape index: {}]
  %s5 = sld [smem:[#allocation0]]
  $region26: #{gated_forward.1} parent=0
    _
  %s7 = ssub.s32 1, %s5
  %s8 = scalar_select 0, %s7, %s5
  // Predicated region
  $region2: #{gated_forward.1} parent=0 // pred_check
    _
  $region3: #{gated_forward.1} parent=0 // pred_check_branch
    %10 = sbr.rel (0) target = $region5
  $region4: #{gated_forward.1} parent=0 // pred_region
    _
  $region5: #{gated_forward.1} parent=0 // pred_fallthru
    _
  // Predicated region
  $region6: #{gated_forward.1} parent=0 // pred_check
    _
  $region7: #{gated_forward.1} parent=0 // pred_check_branch
    %12 = sbr.rel (0) target = $region9
  $region8: #{gated_forward.1} parent=0 // pred_region
    _
  $region9: #{gated_forward.1} parent=0 // pred_fallthru
    _
  // Predicated region
  $region10: #{gated_forward.1} parent=0 // pred_check
    _
  $region11: #{gated_forward.1} parent=0 // pred_check_branch
    %14 = sbr.rel (0) target = $region13
  $region12: #{gated_forward.1} parent=0 // pred_region
    _
  $region13: #{gated_forward.1} parent=0 // pred_fallthru
    _
  // Predicated region
  $region14: #{gated_forward.1} parent=0 // pred_check
    _
  $region15: #{gated_forward.1} parent=0 // pred_check_branch
    %16 = sbr.rel (0) target = $region17
  $region16: #{gated_forward.1} parent=0 // pred_region
    _
  $region17: #{gated_forward.1} parent=0 // pred_fallthru
    _
  %v17 = vld [vmem:[%s2] sm:$0xff]
  %v18 = vld [vmem:[%s2 + $0x8] sm:$0xff]
  %v19 = vld [vmem:[%s2 + $0x10] sm:$0xff]
  %v20 = vld [vmem:[%s2 + $0x18] sm:$0xff]
  %v21 = vld [vmem:[%s3] sm:$0xff]
  %v22 = vld [vmem:[%s3 + $0x8] sm:$0xff]
  %v23 = vld [vmem:[%s3 + $0x10] sm:$0xff]
  %v24 = vld [vmem:[%s3 + $0x18] sm:$0xff]
  %v25 = vld [vmem:[%s0] sm:$0xff]
  %v26 = vld [vmem:[%s0 + $0x8] sm:$0xff]
  %v27 = vld [vmem:[%s0 + $0x10] sm:$0xff]
  %v28 = vld [vmem:[%s0 + $0x18] sm:$0xff]
  %v29 = vld [vmem:[%s1] sm:$0xff]
  %v30 = vld [vmem:[%s1 + $0x8] sm:$0xff]
  %v31 = vld [vmem:[%s1 + $0x10] sm:$0xff]
  %v32 = vld [vmem:[%s1 + $0x18] sm:$0xff]
  %34 = vset.pattern.permute.xlu0 0
  %35 = vperm.xlu0 %34, %v21
  %v36 = vpop.permute.xlu0 %35
  %39 = vset.pattern.permute.xlu0 0
  %40 = vperm.xlu0 %39, %v22
  %v41 = vpop.permute.xlu0 %40
  %44 = vset.pattern.permute.xlu0 0
  %45 = vperm.xlu0 %44, %v23
  %v46 = vpop.permute.xlu0 %45
  %49 = vset.pattern.permute.xlu0 0
  %50 = vperm.xlu0 %49, %v24
  %v51 = vpop.permute.xlu0 %50
  %vm53 = vcmask 261120
  %v55 = vsel %vm53, %v17, 0
  %v58 = vsel %vm53, %v18, 0
  %v61 = vsel %vm53, %v19, 0
  %v64 = vsel %vm53, %v20, 0
  %66 = vmatprep.subr.mxu0 0.0
  %67 = vmatpush1.msra.mxu0 0.0
  %68 = vmatprep.subr.mxu0 0.0
  %69 = vmatpush1.msra.mxu0 0.0
  %70 = vmatprep.subr.mxu0 0.0
  %71 = vmatpush1.msra.mxu0 0.0
  %72 = vmatprep.subr.mxu0 0.0
  %73 = vmatpush1.msra.mxu0 0.0
  %74 = vmatprep.subr.mxu0 0.0
  %75 = vmatpush1.msra.mxu0 0.0
  %76 = vmatprep.subr.mxu0 0.0
  %77 = vmatpush1.msra.mxu0 0.0
  %78 = vmatprep.subr.mxu0 0.0
  %79 = vmatpush1.msra.mxu0 0.0
  %80 = vmatprep.subr.mxu0 0.0
  %81 = vmatpush1.msra.mxu0 0.0
  %82 = vmatprep.subr.mxu0 0.0
  %83 = vmatpush1.msra.mxu0 0.0
  %84 = vmatprep.subr.mxu0 0.0
  %85 = vmatpush1.msra.mxu0 0.0
  %86 = vmatprep.subr.mxu0 0.0
  %87 = vmatpush1.msra.mxu0 0.0
  %88 = vmatprep.subr.mxu0 0.0
  %89 = vmatpush1.msra.mxu0 0.0
  %90 = vmatprep.subr.mxu0 %v32
  %91 = vmatpush1.msra.mxu0 %v31
  %92 = vmatprep.subr.mxu0 %v30
  %93 = vmatpush1.msra.mxu0 %v29
  %94 = vmatprep.subr.mxu0 %v28
  %95 = vmatpush1.msra.mxu0 %v27
  %96 = vmatprep.subr.mxu0 %v26
  %97 = vmatpush1.msra.mxu0 %v25
  %98 = vmatprep.subr.mxu0 0.0
  %99 = vmatpush2.msra.mxu0 0.0
  %100 = vmatprep.subr.mxu0 0.0
  %101 = vmatpush2.msra.mxu0 0.0
  %102 = vmatprep.subr.mxu0 0.0
  %103 = vmatpush2.msra.mxu0 0.0
  %104 = vmatprep.subr.mxu0 0.0
  %105 = vmatpush2.msra.mxu0 0.0
  %106 = vmatprep.subr.mxu0 0.0
  %107 = vmatpush2.msra.mxu0 0.0
  %108 = vmatprep.subr.mxu0 0.0
  %109 = vmatpush2.msra.mxu0 0.0
  %110 = vmatprep.subr.mxu0 0.0
  %111 = vmatpush2.msra.mxu0 0.0
  %112 = vmatprep.subr.mxu0 0.0
  %113 = vmatpush2.msra.mxu0 0.0
  %114 = vmatprep.subr.mxu0 0.0
  %115 = vmatpush2.msra.mxu0 0.0
  %116 = vmatprep.subr.mxu0 0.0
  %117 = vmatpush2.msra.mxu0 0.0
  %118 = vmatprep.subr.mxu0 0.0
  %119 = vmatpush2.msra.mxu0 0.0
  %120 = vmatprep.subr.mxu0 0.0
  %121 = vmatpush2.msra.mxu0 0.0
  %122 = vmatprep.subr.mxu0 0.0
  %123 = vmatpush2.msra.mxu0 0.0
  %124 = vmatprep.subr.mxu0 0.0
  %125 = vmatpush2.msra.mxu0 0.0
  %126 = vmatprep.subr.mxu0 0.0
  %127 = vmatpush2.msra.mxu0 0.0
  %128 = vmatprep.subr.mxu0 0.0
  %129 = vmatpush2.msra.mxu0 0.0
  %130 = vmatprep.mubr.f32.mxu0 0.0
  %131 = vmatmul.mubr.f32.gmra.mxu0 %v55
  %v132 = vpop.f32.mrf.mxu0
  %v133 = vadd.f32 %v36, %v132
  %v134 = vpop.f32.mrf.mxu0
  %v135 = vadd.f32 %v36, %v134
  %136 = vmatprep.mubr.f32.mxu0 0.0
  %137 = vmatmul.mubr.f32.gmra.mxu0 %v58
  %v138 = vpop.f32.mrf.mxu0
  %v139 = vadd.f32 %v41, %v138
  %v140 = vpop.f32.mrf.mxu0
  %v141 = vadd.f32 %v41, %v140
  %142 = vmatprep.mubr.f32.mxu0 0.0
  %143 = vmatmul.mubr.f32.gmra.mxu0 %v61
  %v144 = vpop.f32.mrf.mxu0
  %v145 = vadd.f32 %v46, %v144
  %v146 = vpop.f32.mrf.mxu0
  %v147 = vadd.f32 %v46, %v146
  %148 = vmatprep.mubr.f32.mxu0 0.0
  %149 = vmatmul.mubr.f32.gmra.mxu0 %v64
  %v150 = vpop.f32.mrf.mxu0
  %v151 = vadd.f32 %v51, %v150
  %v152 = vpop.f32.mrf.mxu0
  %v153 = vadd.f32 %v51, %v152
  %154 = vdwg.mxu0
  %v155 = vmax.f32 %v133, 0.0
  %v156 = vmax.f32 %v135, 0.0
  %v157 = vmax.f32 %v139, 0.0
  %v158 = vmax.f32 %v141, 0.0
  %v159 = vmax.f32 %v145, 0.0
  %v160 = vmax.f32 %v147, 0.0
  %v161 = vmax.f32 %v151, 0.0
  %v162 = vmax.f32 %v153, 0.0
  %v163 = vadd.f32 %v155, %v159
  %v164 = vadd.f32 %v156, %v160
  %v165 = vadd.f32 %v157, %v161
  %v166 = vadd.f32 %v158, %v162
  %v167 = vxor.u32 %v163, 2147483648
  %v168 = vxor.u32 %v164, 2147483648
  %v169 = vxor.u32 %v165, 2147483648
  %v170 = vxor.u32 %v166, 2147483648
  %v171 = vmul.f32 %v167, 1.442695
  %v172 = vpow.pop %v171
  %v173 = vmul.f32 %v168, 1.442695
  %v174 = vpow.pop %v173
  %v175 = vmul.f32 %v169, 1.442695
  %v176 = vpow.pop %v175
  %v177 = vmul.f32 %v170, 1.442695
  %v178 = vpow.pop %v177
  %v179 = vadd.f32 %v172, 1.0
  %v180 = vadd.f32 %v174, 1.0
  %v181 = vadd.f32 %v176, 1.0
  %v182 = vadd.f32 %v178, 1.0
  %v183 = vrcp.pop %v179
  %v184 = vmul.f32 1.0, %v183
  %v185 = vrcp.pop %v180
  %v186 = vmul.f32 1.0, %v185
  %v187 = vrcp.pop %v181
  %v188 = vmul.f32 1.0, %v187
  %v189 = vrcp.pop %v182
  %v190 = vmul.f32 1.0, %v189
  %v191 = vsub.f32 %v25, %v29
  %v192 = vsub.f32 %v26, %v30
  %v193 = vsub.f32 %v27, %v31
  %v194 = vsub.f32 %v28, %v32
  %v195 = vmul.f32 %v184, %v191
  %v196 = vmul.f32 %v186, %v192
  %v197 = vmul.f32 %v188, %v193
  %v198 = vmul.f32 %v190, %v194
  %v199 = vadd.f32 %v29, %v195
  %v200 = vadd.f32 %v30, %v196
  %v201 = vadd.f32 %v31, %v197
  %v202 = vadd.f32 %v32, %v198
  %v203 = vmul.f32 %v199, 0.999995
  %v204 = vmul.f32 %v200, 0.999995
  %v205 = vmul.f32 %v201, 0.999995
  %v206 = vmul.f32 %v202, 0.999995
  %207 = vst [vmem:[%s4] sm:$0xff] %v203
  %vm208 = vcmask 195584
  %209 = vst.msk [vmem:[%s4 + $0x8] sm:$0xff] %vm208, %v204
  %210 = vst [vmem:[%s4 + $0x10] sm:$0xff] %v205
  %211 = vst.msk [vmem:[%s4 + $0x18] sm:$0xff] %vm208, %v206
  %s212 = scalar_lea.vmem %s0, 32
  %v213 = vld [vmem:[%s212] sm:$0xff]
  %v214 = vld [vmem:[%s212 + $0x8] sm:$0xff]
  %v215 = vld [vmem:[%s212 + $0x10] sm:$0xff]
  %v216 = vld [vmem:[%s212 + $0x18] sm:$0xff]
  %s217 = scalar_lea.vmem %s1, 32
  %v218 = vld [vmem:[%s217] sm:$0xff]
  %v219 = vld [vmem:[%s217 + $0x8] sm:$0xff]
  %v220 = vld [vmem:[%s217 + $0x10] sm:$0xff]
  %v221 = vld [vmem:[%s217 + $0x18] sm:$0xff]
  %222 = vmatprep.subr.mxu0 0.0
  %223 = vmatpush1.msra.mxu0 0.0
  %224 = vmatprep.subr.mxu0 0.0
  %225 = vmatpush1.msra.mxu0 0.0
  %226 = vmatprep.subr.mxu0 0.0
  %227 = vmatpush1.msra.mxu0 0.0
  %228 = vmatprep.subr.mxu0 0.0
  %229 = vmatpush1.msra.mxu0 0.0
  %230 = vmatprep.subr.mxu0 0.0
  %231 = vmatpush1.msra.mxu0 0.0
  %232 = vmatprep.subr.mxu0 0.0
  %233 = vmatpush1.msra.mxu0 0.0
  %234 = vmatprep.subr.mxu0 0.0
  %235 = vmatpush1.msra.mxu0 0.0
  %236 = vmatprep.subr.mxu0 0.0
  %237 = vmatpush1.msra.mxu0 0.0
  %238 = vmatprep.subr.mxu0 0.0
  %239 = vmatpush1.msra.mxu0 0.0
  %240 = vmatprep.subr.mxu0 0.0
  %241 = vmatpush1.msra.mxu0 0.0
  %242 = vmatprep.subr.mxu0 0.0
  %243 = vmatpush1.msra.mxu0 0.0
  %244 = vmatprep.subr.mxu0 0.0
  %245 = vmatpush1.msra.mxu0 0.0
  %246 = vmatprep.subr.mxu0 %v221
  %247 = vmatpush1.msra.mxu0 %v220
  %248 = vmatprep.subr.mxu0 %v219
  %249 = vmatpush1.msra.mxu0 %v218
  %250 = vmatprep.subr.mxu0 %v216
  %251 = vmatpush1.msra.mxu0 %v215
  %252 = vmatprep.subr.mxu0 %v214
  %253 = vmatpush1.msra.mxu0 %v213
  %254 = vmatprep.subr.mxu0 0.0
  %255 = vmatpush2.msra.mxu0 0.0
  %256 = vmatprep.subr.mxu0 0.0
  %257 = vmatpush2.msra.mxu0 0.0
  %258 = vmatprep.subr.mxu0 0.0
  %259 = vmatpush2.msra.mxu0 0.0
  %260 = vmatprep.subr.mxu0 0.0
  %261 = vmatpush2.msra.mxu0 0.0
  %262 = vmatprep.subr.mxu0 0.0
  %263 = vmatpush2.msra.mxu0 0.0
  %264 = vmatprep.subr.mxu0 0.0
  %265 = vmatpush2.msra.mxu0 0.0
  %266 = vmatprep.subr.mxu0 0.0
  %267 = vmatpush2.msra.mxu0 0.0
  %268 = vmatprep.subr.mxu0 0.0
  %269 = vmatpush2.msra.mxu0 0.0
  %270 = vmatprep.subr.mxu0 0.0
  %271 = vmatpush2.msra.mxu0 0.0
  %272 = vmatprep.subr.mxu0 0.0
  %273 = vmatpush2.msra.mxu0 0.0
  %274 = vmatprep.subr.mxu0 0.0
  %275 = vmatpush2.msra.mxu0 0.0
  %276 = vmatprep.subr.mxu0 0.0
  %277 = vmatpush2.msra.mxu0 0.0
  %278 = vmatprep.subr.mxu0 0.0
  %279 = vmatpush2.msra.mxu0 0.0
  %280 = vmatprep.subr.mxu0 0.0
  %281 = vmatpush2.msra.mxu0 0.0
  %282 = vmatprep.subr.mxu0 0.0
  %283 = vmatpush2.msra.mxu0 0.0
  %284 = vmatprep.subr.mxu0 0.0
  %285 = vmatpush2.msra.mxu0 0.0
  %286 = vmatprep.mubr.f32.mxu0 0.0
  %287 = vmatmul.mubr.f32.gmra.mxu0 %v55
  %v288 = vpop.f32.mrf.mxu0
  %v289 = vadd.f32 %v36, %v288
  %v290 = vpop.f32.mrf.mxu0
  %v291 = vadd.f32 %v36, %v290
  %292 = vmatprep.mubr.f32.mxu0 0.0
  %293 = vmatmul.mubr.f32.gmra.mxu0 %v58
  %v294 = vpop.f32.mrf.mxu0
  %v295 = vadd.f32 %v41, %v294
  %v296 = vpop.f32.mrf.mxu0
  %v297 = vadd.f32 %v41, %v296
  %298 = vmatprep.mubr.f32.mxu0 0.0
  %299 = vmatmul.mubr.f32.gmra.mxu0 %v61
  %v300 = vpop.f32.mrf.mxu0
  %v301 = vadd.f32 %v46, %v300
  %v302 = vpop.f32.mrf.mxu0
  %v303 = vadd.f32 %v46, %v302
  %304 = vmatprep.mubr.f32.mxu0 0.0
  %305 = vmatmul.mubr.f32.gmra.mxu0 %v64
  %v306 = vpop.f32.mrf.mxu0
  %v307 = vadd.f32 %v51, %v306
  %v308 = vpop.f32.mrf.mxu0
  %v309 = vadd.f32 %v51, %v308
  %310 = vdwg.mxu0
  %v311 = vmax.f32 %v289, 0.0
  %v312 = vmax.f32 %v291, 0.0
  %v313 = vmax.f32 %v295, 0.0
  %v314 = vmax.f32 %v297, 0.0
  %v315 = vmax.f32 %v301, 0.0
  %v316 = vmax.f32 %v303, 0.0
  %v317 = vmax.f32 %v307, 0.0
  %v318 = vmax.f32 %v309, 0.0
  %v319 = vadd.f32 %v311, %v315
  %v320 = vadd.f32 %v312, %v316
  %v321 = vadd.f32 %v313, %v317
  %v322 = vadd.f32 %v314, %v318
  %v323 = vxor.u32 %v319, 2147483648
  %v324 = vxor.u32 %v320, 2147483648
  %v325 = vxor.u32 %v321, 2147483648
  %v326 = vxor.u32 %v322, 2147483648
  %v327 = vmul.f32 %v323, 1.442695
  %v328 = vpow.pop %v327
  %v329 = vmul.f32 %v324, 1.442695
  %v330 = vpow.pop %v329
  %v331 = vmul.f32 %v325, 1.442695
  %v332 = vpow.pop %v331
  %v333 = vmul.f32 %v326, 1.442695
  %v334 = vpow.pop %v333
  %v335 = vadd.f32 %v328, 1.0
  %v336 = vadd.f32 %v330, 1.0
  %v337 = vadd.f32 %v332, 1.0
  %v338 = vadd.f32 %v334, 1.0
  %v339 = vrcp.pop %v335
  %v340 = vmul.f32 1.0, %v339
  %v341 = vrcp.pop %v336
  %v342 = vmul.f32 1.0, %v341
  %v343 = vrcp.pop %v337
  %v344 = vmul.f32 1.0, %v343
  %v345 = vrcp.pop %v338
  %v346 = vmul.f32 1.0, %v345
  %v347 = vsub.f32 %v213, %v218
  %v348 = vsub.f32 %v214, %v219
  %v349 = vsub.f32 %v215, %v220
  %v350 = vsub.f32 %v216, %v221
  %v351 = vmul.f32 %v340, %v347
  %v352 = vmul.f32 %v342, %v348
  %v353 = vmul.f32 %v344, %v349
  %v354 = vmul.f32 %v346, %v350
  %v355 = vadd.f32 %v218, %v351
  %v356 = vadd.f32 %v219, %v352
  %v357 = vadd.f32 %v220, %v353
  %v358 = vadd.f32 %v221, %v354
  %v359 = vmul.f32 %v355, 0.999995
  %v360 = vmul.f32 %v356, 0.999995
  %v361 = vmul.f32 %v357, 0.999995
  %v362 = vmul.f32 %v358, 0.999995
  %s363 = scalar_lea.vmem %s4, 32
  %364 = vst [vmem:[%s363] sm:$0xff] %v359
  %365 = vst.msk [vmem:[%s363 + $0x8] sm:$0xff] %vm208, %v360
  %366 = vst [vmem:[%s363 + $0x10] sm:$0xff] %v361
  %367 = vst.msk [vmem:[%s363 + $0x18] sm:$0xff] %vm208, %v362
  // Predicated region
  $region18: #{gated_forward.1} parent=0 // pred_check
    _
  $region19: #{gated_forward.1} parent=0 // pred_check_branch
    %369 = sbr.rel (0) target = $region21
  $region20: #{gated_forward.1} parent=0 // pred_region
    _
  $region21: #{gated_forward.1} parent=0 // pred_fallthru
    _
  // Predicated region
  $region22: #{gated_forward.1} parent=0 // pred_check
    _
  $region23: #{gated_forward.1} parent=0 // pred_check_branch
    %371 = sbr.rel (0) target = $region25
  $region24: #{gated_forward.1} parent=0 // pred_region
    _
  $region25: #{gated_forward.1} parent=0 // pred_fallthru
    _

</llo_original>
